<compile_context>
chip_gen: v7x
topology: tpu7x:2x2x1
jax: 0.10.0
libtpu: 0.0.40
codegen_flags: <defaults>
</compile_context>

<pallas_src>
import math

import jax
import jax.numpy as jnp
from jax.experimental import pallas as pl
from jax.experimental.pallas import tpu as pltpu


# ----------------------------------------------------------------------------------------
# Kernel
# ----------------------------------------------------------------------------------------
def _make_attention_kernel(bt: int, seq: int, fp: int, mxu_dtype):
    """Kernel for one grid step: `bt` batch elements, each (seq, fp)."""

    def kernel(x_ref, w_ref, b_ref, o_ref):
        # x_ref: (bt*seq, fp)   bf16 MXU operand
        # w_ref: (fp, 3*fp)     bf16, pre-transposed + pre-scaled fused [Wq | Wk | Wv]
        # b_ref: (1, 3*fp)      f32 fused bias
        # o_ref: (bt*seq, fp)   output (lane-dense: fp % 128 == 0)
        x = x_ref[...]
        w = w_ref[...]

        # Single fused QKV projection: bf16 operands, f32 accumulation, f32 bias add.
        qkv_f32 = jnp.dot(x, w, preferred_element_type=jnp.float32) + b_ref[...]

        # Cast once to bf16 so the two attention matmuls below run as native bf16 MXU
        # passes (f32 MXU operands would be emulated multi-pass, ~3x slower).
        qkv = qkv_f32.astype(mxu_dtype).reshape(bt, seq, 3 * fp)
        q = qkv[:, :, 0 * fp:1 * fp]          # 1/sqrt(F) already folded into Wq/bq
        k = qkv[:, :, 1 * fp:2 * fp]
        v = qkv[:, :, 2 * fp:3 * fp]

        # Scores via batched contraction over the feature axis (no K transpose materialized).
        scores = jnp.einsum("bqf,bkf->bqk", q, k,
                            preferred_element_type=jnp.float32)   # (bt, seq, seq) f32

        # Numerically stable softmax in f32; denominator via EUP approx reciprocal (free slot).
        m = jnp.max(scores, axis=-1, keepdims=True)
        e = jnp.exp(scores - m)
        denom = jnp.sum(e, axis=-1, keepdims=True)
        attn = (e * pl.reciprocal(denom, approx=True)).astype(mxu_dtype)

        # Attention-weighted values: bf16 operands, f32 accumulation.
        out = jnp.einsum("bqk,bkf->bqf", attn, v,
                         preferred_element_type=jnp.float32)      # (bt, seq, fp)
        o_ref[...] = out.reshape(bt * seq, fp).astype(o_ref.dtype)

    return kernel


# ----------------------------------------------------------------------------------------
# Wrapper
# ----------------------------------------------------------------------------------------
def _vmem_capacity_bytes() -> int:
    """Physical VMEM of the current chip, conservative 64 MiB (v7x) fallback."""
    try:
        info = pltpu.get_tpu_info()
        for attr in ("vmem_capacity_bytes", "vmem_size_bytes", "vmem_bytes"):
            v = getattr(info, attr, None)
            if v:
                return int(v)
    except Exception:
        pass
    return 64 * 2 ** 20


def _est_vmem_bytes(rows, bt, seq, fp, in_bytes, out_bytes):
    """Rough per-step VMEM footprint for block-size selection."""
    return int(
        2 * rows * fp * in_bytes            # x blocks (double-buffered)
        + 2 * rows * fp * out_bytes         # out blocks (double-buffered)
        + fp * 3 * fp * in_bytes            # fused weights (single-buffered, Buffered(1))
        + 3 * fp * 4                        # fused bias   (single-buffered)
        + rows * 3 * fp * (4 + in_bytes)    # qkv f32 accumulator + bf16 copy
        + bt * seq * seq * (4 + 4 + in_bytes)  # scores f32, exp f32, attn bf16
        + rows * fp * 4                     # f32 output before cast
    )


def prepare_self_attention_params(wq, bq, wk, bk, wv, bv, *, mxu_dtype=jnp.bfloat16):
    """One-time (hoisted) weight prep: transpose to (in,out), fold 1/sqrt(F) into Wq/bq,
    zero-pad the feature dim to a multiple of 128 (lane-dense, numerically exact), fuse
    Q/K/V into a single (Fp, 3*Fp) weight slab + (1, 3*Fp) bias, cast weights to bf16."""
    F = wq.shape[1]
    scale = 1.0 / math.sqrt(F)
    Fp = ((F + 127) // 128) * 128
    pad_f = Fp - F

    w_fused = jnp.concatenate(
        [jnp.pad((wq * scale).T, ((0, pad_f), (0, pad_f))),
         jnp.pad(wk.T, ((0, pad_f), (0, pad_f))),
         jnp.pad(wv.T, ((0, pad_f), (0, pad_f)))], axis=1).astype(mxu_dtype)
    b_fused = jnp.concatenate(
        [jnp.pad(bq * scale, (0, pad_f)),
         jnp.pad(bk, (0, pad_f)),
         jnp.pad(bv, (0, pad_f))]).reshape(1, 3 * Fp).astype(jnp.float32)

    # TODO(synk): on v7x, fp8(e4m3) operands for the projection matmul (keep bf16 for the
    # attention einsums) would roughly double projection throughput if accuracy allows.
    return {"w_fused": w_fused, "b_fused": b_fused, "F": F, "Fp": Fp, "mxu_dtype": mxu_dtype}


def self_attention(x, params, *, out_dtype=None):
    """x: (B, S, F) f32. params: output of prepare_self_attention_params."""
    B, S, F = x.shape
    assert F == params["F"], "feature dim mismatch with prepared params"
    Fp = params["Fp"]
    mxu_dtype = params["mxu_dtype"]
    pad_f = Fp - F
    out_dtype = out_dtype or x.dtype

    # Fold batch into matmul rows: (B*S, Fp), bf16 MXU operand (also halves DMA bytes).
    x_rows = jnp.pad(x, ((0, 0), (0, 0), (0, pad_f))).reshape(B * S, Fp).astype(mxu_dtype)

    in_bytes = jnp.dtype(mxu_dtype).itemsize
    out_bytes = jnp.dtype(out_dtype).itemsize

    # -------- block-size (bt) selection: VMEM-budget driven --------
    cap = _vmem_capacity_bytes()
    budget = (cap * 3) // 4  # leave headroom for compiler scratch / spill slack

    def fits(cand):
        return _est_vmem_bytes(cand * S, cand, S, Fp, in_bytes, out_bytes) <= budget

    # Aim for ~512 rows per step (amortizes ~0.35us/step overhead), but:
    #   * cap bt at B//2 when B >= 2 so the parallel grid axis has >= 2 steps
    #     (keeps both v7x TensorCores busy; negligible cost on v5e/v6e),
    #   * require 16-sublane alignment for bf16 blocks (native (16,128) tile),
    #     falling back to 8-alignment, and always respect the VMEM budget.
    target_rows = 512
    max_bt = min(B, max(1, -(-target_rows // S)))
    if B >= 2:
        max_bt = min(max_bt, max(1, B // 2))

    divisors = [d for d in range(1, B + 1) if B % d == 0]
    bt = None
    for align in (16, 8):
        cands = [d for d in divisors if d <= max_bt and (d * S) % align == 0 and fits(d)]
        if cands:
            bt = max(cands)
            break
    if bt is None:
        # Nothing aligned fits the budget: take the smallest aligned divisor (min VMEM).
        for align in (16, 8):
            cands = [d for d in divisors if (d * S) % align == 0]
            if cands:
                bt = min(cands)
                break
    if bt is None:
        # S not sublane-aligned: full-array block is the only always-legal layout.
        # TODO(synk): for misaligned S, pad S and add a -inf additive mask on the padded
        # key columns before softmax (plain zero-padding of S would corrupt the denominator).
        bt = B

    rows = bt * S
    grid = (B // bt,)

    est = _est_vmem_bytes(rows, bt, S, Fp, in_bytes, out_bytes)
    # Never request more scoped VMEM than the chip physically has (v7x: 64 MiB).
    vmem_limit = int(min(int(cap * 0.85), max(32 * 2 ** 20, 2 * est)))

    grid_spec = pl.GridSpec(
        grid=grid,
        in_specs=[
            pl.BlockSpec((rows, Fp), lambda i: (i, 0)),       # activations (pipelined)
            # Constant-index weight/bias blocks: single-buffer them (double-buffering a
            # never-changing block only wastes VMEM -- matters most on v7x's 64 MiB).
            pl.BlockSpec((Fp, 3 * Fp), lambda i: (0, 0), pipeline_mode=pl.Buffered(1)),
            pl.BlockSpec((1, 3 * Fp), lambda i: (0, 0), pipeline_mode=pl.Buffered(1)),
        ],
        out_specs=pl.BlockSpec((rows, Fp), lambda i: (i, 0)),
    )

    out_rows = pl.pallas_call(
        _make_attention_kernel(bt, S, Fp, mxu_dtype),
        out_shape=jax.ShapeDtypeStruct((B * S, Fp), out_dtype),
        grid_spec=grid_spec,
        compiler_params=pltpu.CompilerParams(
            dimension_semantics=("parallel",),
            vmem_limit_bytes=vmem_limit,
        ),
    )(x_rows, params["w_fused"], params["b_fused"])

    # TODO(synk): for long sequences (S >~ 1k) switch the score/softmax/AV section to a
    # flash-style KV-tiled loop (second "arbitrary" grid axis + online softmax) so the
    # (bt,S,S) scores/attn are never materialized and VMEM is bounded independent of S.
    return out_rows.reshape(B, S, Fp)[:, :, :F]


def self_attention_ref(x, wq, bq, wk, bk, wv, bv):
    """Pure-JAX reference matching the PyTorch SelfAttention module."""
    q = jnp.einsum("bsf,gf->bsg", x, wq) + bq
    k = jnp.einsum("bsf,gf->bsg", x, wk) + bk
    v = jnp.einsum("bsf,gf->bsg", x, wv) + bv
    scores = jnp.einsum("bqf,bkf->bqk", q, k) / math.sqrt(x.shape[-1])
    attn = jax.nn.softmax(scores, axis=-1)
    return jnp.einsum("bqk,bkf->bqf", attn, v)


if __name__ == "__main__":
    B, S, F = 2, 8, 32  # batch, sequence length, in_features

    key = jax.random.PRNGKey(0)
    kx, kwq, kbq, kwk, kbk, kwv, kbv = jax.random.split(key, 7)

    x = jax.random.normal(kx, (B, S, F), dtype=jnp.float32)

    # Deterministic parameter init (PyTorch Linear default: U(-1/sqrt(F), 1/sqrt(F)))
    bound = 1.0 / math.sqrt(F)
    wq = jax.random.uniform(kwq, (F, F), jnp.float32, -bound, bound)
    bq = jax.random.uniform(kbq, (F,), jnp.float32, -bound, bound)
    wk = jax.random.uniform(kwk, (F, F), jnp.float32, -bound, bound)
    bk = jax.random.uniform(kbk, (F,), jnp.float32, -bound, bound)
    wv = jax.random.uniform(kwv, (F, F), jnp.float32, -bound, bound)
    bv = jax.random.uniform(kbv, (F,), jnp.float32, -bound, bound)

    # Hoisted (one-time) weight prep; not re-materialized per call.
    params = prepare_self_attention_params(wq, bq, wk, bk, wv, bv)

    out = self_attention(x, params)
    out = jax.block_until_ready(out)

    ref = self_attention_ref(x, wq, bq, wk, bk, wv, bv)
    assert out.shape == (B, S, F)
    # bf16 MXU operands for all three matmuls + approx reciprocal -> small drift vs f32 ref.
    assert jnp.allclose(out, ref, atol=5e-2, rtol=5e-2), "mismatch vs JAX reference"

    print("KERNEL_OK")
</pallas_src>

<mosaic_0001>
module attributes {stable_mosaic.version = 11 : i64} {
  func.func @kernel(%arg0: i32, %arg1: memref<8x128xbf16, #tpu.memory_space<vmem>>, %arg2: memref<128x384xbf16, #tpu.memory_space<vmem>>, %arg3: memref<1x384xf32, #tpu.memory_space<vmem>>, %arg4: memref<8x128xf32, #tpu.memory_space<vmem>>) attributes {dimension_semantics = [#tpu.dimension_semantics<parallel>], iteration_bounds = array<i64: 2>, scalar_prefetch = 0 : i64, scratch_operands = 0 : i64, tpu.core_type = #tpu.core_type<tc>, window_params = [{transform_indices = @transform_0, window_bounds = array<i64: 8, 128>}, {pipeline_mode = #tpu.pipeline_mode<synchronous>, transform_indices = @transform_1, window_bounds = array<i64: 128, 384>}, {pipeline_mode = #tpu.pipeline_mode<synchronous>, transform_indices = @transform_2, window_bounds = array<i64: 1, 384>}, {transform_indices = @transform_3, window_bounds = array<i64: 8, 128>}]} {
    %c0 = arith.constant 0 : index
    %c0_0 = arith.constant 0 : index
    %0 = vector.load %arg1[%c0, %c0_0] : memref<8x128xbf16, #tpu.memory_space<vmem>>, vector<8x128xbf16>
    %c0_1 = arith.constant 0 : index
    %c0_2 = arith.constant 0 : index
    %1 = vector.load %arg2[%c0_1, %c0_2] : memref<128x384xbf16, #tpu.memory_space<vmem>>, vector<128x384xbf16>
    %cst = arith.constant dense<0.000000e+00> : vector<8x384xf32>
    %2 = tpu.matmul %0, %1, %cst {dimension_numbers = #tpu.dot_dimension_numbers<[1], [0], [0], [1], [0, 0, 1, 1], [], []>} : vector<8x128xbf16>, vector<128x384xbf16>, vector<8x384xf32> -> vector<8x384xf32>
    %c0_3 = arith.constant 0 : index
    %c0_4 = arith.constant 0 : index
    %3 = vector.load %arg3[%c0_3, %c0_4] : memref<1x384xf32, #tpu.memory_space<vmem>>, vector<1x384xf32>
    %4 = vector.broadcast %3 : vector<1x384xf32> to vector<8x384xf32>
    %5 = arith.addf %2, %4 : vector<8x384xf32>
    %6 = arith.truncf %5 : vector<8x384xf32> to vector<8x384xbf16>
    %7 = vector.shape_cast %6 : vector<8x384xbf16> to vector<1x8x384xbf16>
    %8 = vector.extract_strided_slice %7 {offsets = [0, 0, 0], sizes = [1, 8, 128], strides = [1, 1, 1]} : vector<1x8x384xbf16> to vector<1x8x128xbf16>
    %9 = vector.extract_strided_slice %7 {offsets = [0, 0, 128], sizes = [1, 8, 128], strides = [1, 1, 1]} : vector<1x8x384xbf16> to vector<1x8x128xbf16>
    %10 = vector.extract_strided_slice %7 {offsets = [0, 0, 256], sizes = [1, 8, 128], strides = [1, 1, 1]} : vector<1x8x384xbf16> to vector<1x8x128xbf16>
    "tpu.trace_start"() <{level = 10 : i32, message = "bqf,bkf->bqk"}> : () -> ()
    %cst_5 = arith.constant dense<0.000000e+00> : vector<1x8x8xf32>
    %11 = tpu.matmul %8, %9, %cst_5 {dimension_numbers = #tpu.dot_dimension_numbers<[2], [2], [1], [1], [0, 0, 0, 1, 1, 1], [0], [0]>} : vector<1x8x128xbf16>, vector<1x8x128xbf16>, vector<1x8x8xf32> -> vector<1x8x8xf32>
    "tpu.trace_stop"() : () -> ()
    %cst_6 = arith.constant dense<0xFF800000> : vector<1x8xf32>
    %12 = vector.multi_reduction <maximumf>, %11, %cst_6 [2] : vector<1x8x8xf32> to vector<1x8xf32>
    %13 = vector.shape_cast %12 : vector<1x8xf32> to vector<1x8x1xf32>
    %14 = vector.broadcast %13 : vector<1x8x1xf32> to vector<1x8x8xf32>
    %15 = arith.subf %11, %14 : vector<1x8x8xf32>
    %16 = math.exp %15 : vector<1x8x8xf32>
    %cst_7 = arith.constant dense<0.000000e+00> : vector<1x8xf32>
    %17 = vector.multi_reduction <add>, %16, %cst_7 [2] : vector<1x8x8xf32> to vector<1x8xf32>
    %18 = vector.shape_cast %17 : vector<1x8xf32> to vector<1x8x1xf32>
    %19 = tpu.reciprocal %18 {approx = true} : vector<1x8x1xf32> -> vector<1x8x1xf32>
    %20 = vector.broadcast %19 : vector<1x8x1xf32> to vector<1x8x8xf32>
    %21 = arith.mulf %16, %20 : vector<1x8x8xf32>
    %22 = arith.truncf %21 : vector<1x8x8xf32> to vector<1x8x8xbf16>
    "tpu.trace_start"() <{level = 10 : i32, message = "bqk,bkf->bqf"}> : () -> ()
    %cst_8 = arith.constant dense<0.000000e+00> : vector<1x8x128xf32>
    %23 = tpu.matmul %22, %10, %cst_8 {dimension_numbers = #tpu.dot_dimension_numbers<[2], [1], [1], [2], [0, 0, 0, 1, 1, 2], [0], [0]>} : vector<1x8x8xbf16>, vector<1x8x128xbf16>, vector<1x8x128xf32> -> vector<1x8x128xf32>
    "tpu.trace_stop"() : () -> ()
    %24 = vector.shape_cast %23 : vector<1x8x128xf32> to vector<8x128xf32>
    %c0_9 = arith.constant 0 : index
    %c0_10 = arith.constant 0 : index
    %25 = vector.load %arg4[%c0_9, %c0_10] : memref<8x128xf32, #tpu.memory_space<vmem>>, vector<8x128xf32>
    tpu.vector_store %arg4[%c0_9, %c0_10], %24 {strides = array<i32>} : memref<8x128xf32, #tpu.memory_space<vmem>>, vector<8x128xf32>,
    return
  }
  func.func @transform_0(%arg0: i32) -> (i32, i32) {
    %c0_i32 = arith.constant 0 : i32
    %c0_i32_0 = arith.constant 0 : i32
    return %arg0, %c0_i32 : i32, i32
  }
  func.func @transform_1(%arg0: i32) -> (i32, i32) {
    %c0_i32 = arith.constant 0 : i32
    %c0_i32_0 = arith.constant 0 : i32
    %c0_i32_1 = arith.constant 0 : i32
    return %c0_i32, %c0_i32_0 : i32, i32
  }
  func.func @transform_2(%arg0: i32) -> (i32, i32) {
    %c0_i32 = arith.constant 0 : i32
    %c0_i32_0 = arith.constant 0 : i32
    %c0_i32_1 = arith.constant 0 : i32
    return %c0_i32, %c0_i32_0 : i32, i32
  }
  func.func @transform_3(%arg0: i32) -> (i32, i32) {
    %c0_i32 = arith.constant 0 : i32
    %c0_i32_0 = arith.constant 0 : i32
    return %arg0, %c0_i32 : i32, i32
  }
}

</mosaic_0001>

<llo_original>
// kernel: tpu_custom_call.1
$region0: #{tpu_custom_call.1}
  #allocation0 [shape = 'u32[]', space=smem, size = 0x4, offset = 0x4, fixed_abs, tag = 'smem constant byte address 0x4 - core index']
  #allocation1 [shape = 'u32[144,128]{1,0:T(1,128)}', space=vmem, size = 0x12000, scoped, tag = 'internal scratch']
  %s0 = inlined_call_operand.hbm [shape: bf16[16,128], index: 0, kind: input, shape index: {}]
  %s1 = inlined_call_operand.hbm [shape: bf16[128,384], index: 1, kind: input, shape index: {}]
  %s2 = inlined_call_operand.vmem [shape: f32[1,384], index: 2, kind: input, shape index: {}]
  %s3 = inlined_call_operand.hbm [shape: f32[16,128], index: 3, kind: output, shape index: {}]
  %s4 = sld [smem:[#allocation0]]
  $region53: #{tpu_custom_call.1} parent=0
    _
  %s6 = ssub.s32 1, %s4
  %s7 = scalar_select 0, %s6, %s4
  $region1: #{tpu_custom_call.1} parent=0
    #allocation2 [shape = 'u8[4096]{0}', space=vmem, size = 0x1000, scoped, tag = 'input window, operand 0']
    #allocation3 [shape = 's32[2]{0}', space=sflag, size = 0x8, scoped, tag = 'scoped memory for tpu_custom_call.1']
    #allocation4 [shape = 's32[2]{0}', space=sflag, size = 0x8, scoped, tag = 'scoped memory for tpu_custom_call.1']
    #allocation5 [shape = 'u8[98304]{0}', space=vmem, size = 0x18000, scoped, tag = 'input window, operand 1, single buffered']
    #allocation6 [shape = 's32[1]{0}', space=sflag, size = 0x4, scoped, tag = 'scoped memory for tpu_custom_call.1']
    #allocation7 [shape = 'u8[8192]{0}', space=vmem, size = 0x2000, scoped, tag = 'output window, operand 0']
    %8 = vsyncpa [#allocation3], 0
    %s9 = scalar_lea.sflag [#allocation3], 1
    %10 = vsyncpa %s9, 0
    %11 = vsyncpa [#allocation6], 0
    %12 = vsyncpa [#allocation4], 0
    %s13 = scalar_lea.sflag [#allocation4], 1
    %14 = vsyncpa %s13, 0
    loop: start=0, step=1, limit=4
    $region2: #{tpu_custom_call.1} parent=1 // loop_pre_header
      _
    $region3: #{tpu_custom_call.1} parent=1 // loop_header
      %s16 = sphi 0, %s20
      %p17 = scmp.ge.s32.totalorder %s16, 4
      %s26 = sphi 0, %s28
      %s29 = sphi 0, %s26
      %s30 = sphi 0, %s29
      %s46 = sphi 0, %s30
      %s50 = sphi 0, %s50
      %s52 = sphi 0, %s50
      %s53 = sphi 0, %s52
      %s67 = sphi 0, %s53
      %s71 = sphi 0, %s71
      %s73 = sphi 0, %s71
      %s74 = sphi 0, %s73
      %s88 = sphi 0, %s74
      %s94 = sphi 0, %s96
      %s97 = sphi 0, %s94
      %s98 = sphi 0, %s97
      %s114 = sphi 0, %s98
    $region4: #{tpu_custom_call.1} parent=1 // loop_header_branch
      %19 = sbr.rel (%p17) target = $region8
    $region5: #{tpu_custom_call.1} parent=1 // loop_body
      %s21 = ssub.s32 %s16, 1
      %s22 = ssub.s32 %s16, 2
      %s23 = sadd.s32 %s16, 1
      %s24 = ssub.s32 %s16, %s23
      %p25 = scmp.eq.s32.totalorder %s24, 0
      %s27 = sadd.s32 %s26, 1
      %s28 = scalar_select %p25, %s26, %s27
      %p31 = pneg %p25
      %p32 = scmp.eq.s32.totalorder %s16, 1
      %p33 = por %p31, %p32
      %p34 = scmp.ne.s32.totalorder %s26, %s29
      %p35 = scmp.eq.s32.totalorder %s16, 0
      %p36 = por %p34, %p35
      %p37 = scmp.ne.s32.totalorder %s26, %s29
      %p38 = scmp.eq.s32.totalorder %s21, 1
      %p39 = por %p37, %p38
      %p40 = scmp.ne.s32.totalorder %s29, %s30
      %p41 = scmp.eq.s32.totalorder %s21, 0
      %p42 = por %p40, %p41
      %p43 = scmp.ne.s32.totalorder %s29, %s30
      %p44 = scmp.eq.s32.totalorder %s22, 1
      %p45 = por %p43, %p44
      %p47 = scmp.ne.s32.totalorder %s30, %s46
      %p48 = scmp.eq.s32.totalorder %s22, 0
      %p49 = por %p47, %p48
      %s51 = sadd.s32 %s50, 1
      %p54 = scmp.eq.s32.totalorder %s16, 1
      %p55 = scmp.ne.s32.totalorder %s50, %s52
      %p56 = scmp.eq.s32.totalorder %s16, 0
      %p57 = por %p55, %p56
      %p58 = scmp.ne.s32.totalorder %s50, %s52
      %p59 = scmp.eq.s32.totalorder %s21, 1
      %p60 = por %p58, %p59
      %p61 = scmp.ne.s32.totalorder %s52, %s53
      %p62 = scmp.eq.s32.totalorder %s21, 0
      %p63 = por %p61, %p62
      %p64 = scmp.ne.s32.totalorder %s52, %s53
      %p65 = scmp.eq.s32.totalorder %s22, 1
      %p66 = por %p64, %p65
      %p68 = scmp.ne.s32.totalorder %s53, %s67
      %p69 = scmp.eq.s32.totalorder %s22, 0
      %p70 = por %p68, %p69
      %s72 = sadd.s32 %s71, 1
      %p75 = scmp.eq.s32.totalorder %s16, 1
      %p76 = scmp.ne.s32.totalorder %s71, %s73
      %p77 = scmp.eq.s32.totalorder %s16, 0
      %p78 = por %p76, %p77
      %p79 = scmp.ne.s32.totalorder %s71, %s73
      %p80 = scmp.eq.s32.totalorder %s21, 1
      %p81 = por %p79, %p80
      %p82 = scmp.ne.s32.totalorder %s73, %s74
      %p83 = scmp.eq.s32.totalorder %s21, 0
      %p84 = por %p82, %p83
      %p85 = scmp.ne.s32.totalorder %s73, %s74
      %p86 = scmp.eq.s32.totalorder %s22, 1
      %p87 = por %p85, %p86
      %p89 = scmp.ne.s32.totalorder %s74, %s88
      %p90 = scmp.eq.s32.totalorder %s22, 0
      %p91 = por %p89, %p90
      %s92 = ssub.s32 %s16, %s23
      %p93 = scmp.eq.s32.totalorder %s92, 0
      %s95 = sadd.s32 %s94, 1
      %s96 = scalar_select %p93, %s94, %s95
      %p99 = pneg %p93
      %p100 = scmp.eq.s32.totalorder %s16, 1
      %p101 = por %p99, %p100
      %p102 = scmp.ne.s32.totalorder %s94, %s97
      %p103 = scmp.eq.s32.totalorder %s16, 0
      %p104 = por %p102, %p103
      %p105 = scmp.ne.s32.totalorder %s94, %s97
      %p106 = scmp.eq.s32.totalorder %s21, 1
      %p107 = por %p105, %p106
      %p108 = scmp.ne.s32.totalorder %s97, %s98
      %p109 = scmp.eq.s32.totalorder %s21, 0
      %p110 = por %p108, %p109
      %p111 = scmp.ne.s32.totalorder %s97, %s98
      %p112 = scmp.eq.s32.totalorder %s22, 1
      %p113 = por %p111, %p112
      %p115 = scmp.ne.s32.totalorder %s98, %s114
      %p116 = scmp.eq.s32.totalorder %s22, 0
      %p117 = por %p115, %p116
      %p118 = scmp.le.s32.totalorder 1, %s16
      %p119 = scmp.lt.s32.totalorder %s16, 3
      %p120 = pnand %p118, %p119
      %p121 = pneg %p120
      // Predicated region
      $region9: #{tpu_custom_call.1} parent=5 // pred_check
        _
      $region10: #{tpu_custom_call.1} parent=5 // pred_check_branch
        %123 = sbr.rel (%p120) target = $region12
      $region11: #{tpu_custom_call.1} parent=5 // pred_region
        %s124 = ssub.s32 %s16, 1
        // Predicated region
        $region13: #{tpu_custom_call.1} parent=11 // pred_check
          %p125 = pneg %p63
        $region14: #{tpu_custom_call.1} parent=11 // pred_check_branch
          %127 = sbr.rel (%p125) target = $region16
        $region15: #{tpu_custom_call.1} parent=11 // pred_region
          %s129 = ssub.s32 3072, 3072
          %130 = vsyncadd [#allocation6], %s129
          %s131 = sshll.u32 [#allocation5], 4
          %s132 = int_to_ptr.vmem [resolvable:$true] %s131
          %137 = dma.hbm_to_vmem [thread:$0]  %s1, 3072, %s132, [#allocation6], 192, 192, 12
        $region16: #{tpu_custom_call.1} parent=11 // pred_fallthru
          _
        // Predicated region
        $region17: #{tpu_custom_call.1} parent=11 // pred_check
          %p138 = pneg %p84
        $region18: #{tpu_custom_call.1} parent=11 // pred_check_branch
          %140 = sbr.rel (%p138) target = $region20
        $region19: #{tpu_custom_call.1} parent=11 // pred_region
          _
        $region20: #{tpu_custom_call.1} parent=11 // pred_fallthru
          _
      $region12: #{tpu_custom_call.1} parent=5 // pred_fallthru
        _
      %p141 = scmp.lt.s32.totalorder %s16, 2
      // Predicated region
      $region21: #{tpu_custom_call.1} parent=5 // pred_check
        %p142 = pneg %p141
      $region22: #{tpu_custom_call.1} parent=5 // pred_check_branch
        %144 = sbr.rel (%p142) target = $region24
      $region23: #{tpu_custom_call.1} parent=5 // pred_region
        // Predicated region
        $region25: #{tpu_custom_call.1} parent=23 // pred_check
          %p145 = pneg %p36
        $region26: #{tpu_custom_call.1} parent=23 // pred_check_branch
          %147 = sbr.rel (%p145) target = $region28
        $region27: #{tpu_custom_call.1} parent=23 // pred_region
          %s148 = sand.u32 %s26, 1
          %s149 = scalar_lea.sflag [#allocation3], %s148
          %s150 = sand.u32 %s26, 1
          %s151 = smul.addr %s150, 4
          %s152 = scalar_lea.vmem [#allocation2], %s151
          %s154 = ssub.s32 64, 64
          %155 = vsyncadd %s149, %s154
          %s156 = smul.addr %s16, 64
          %s157 = scalar_lea.hbm %s0, %s156
          %s159 = sshll.u32 %s152, 4
          %s160 = int_to_ptr.vmem [resolvable:$true] %s159
          %162 = dma.hbm_to_vmem [thread:$0]  %s157, 64, %s160, %s149
        $region28: #{tpu_custom_call.1} parent=23 // pred_fallthru
          _
      $region24: #{tpu_custom_call.1} parent=5 // pred_fallthru
        _
      %p163 = scmp.le.s32.totalorder 1, %s16
      %p164 = scmp.lt.s32.totalorder %s16, 3
      %p165 = pnand %p163, %p164
      %p166 = pneg %p165
      // Predicated region
      $region29: #{tpu_custom_call.1} parent=5 // pred_check
        _
      $region30: #{tpu_custom_call.1} parent=5 // pred_check_branch
        %168 = sbr.rel (%p165) target = $region32
      $region31: #{tpu_custom_call.1} parent=5 // pred_region
        %s169 = ssub.s32 %s16, 1
        %s170 = sand.u32 %s29, 1
        %s171 = scalar_lea.sflag [#allocation3], %s170
        %s172 = sand.u32 %s29, 1
        %s173 = smul.addr %s172, 4
        %s174 = scalar_lea.vmem [#allocation2], %s173
        // Predicated region
        $region33: #{tpu_custom_call.1} parent=31 // pred_check
          %p175 = pneg %p42
        $region34: #{tpu_custom_call.1} parent=31 // pred_check_branch
          %177 = sbr.rel (%p175) target = $region36
        $region35: #{tpu_custom_call.1} parent=31 // pred_region
          %178 = dma.done %s171, 64
        $region36: #{tpu_custom_call.1} parent=31 // pred_fallthru
          _
        // Predicated region
        $region37: #{tpu_custom_call.1} parent=31 // pred_check
          %p179 = pneg %p63
        $region38: #{tpu_custom_call.1} parent=31 // pred_check_branch
          %181 = sbr.rel (%p179) target = $region40
        $region39: #{tpu_custom_call.1} parent=31 // pred_region
          %182 = dma.done [#allocation6], 3072
        $region40: #{tpu_custom_call.1} parent=31 // pred_fallthru
          _
        %s183 = sand.u32 %s29, 1
        %s184 = scalar_lea.sflag [#allocation3], %s183
        %s185 = sand.u32 %s29, 1
        %s186 = smul.addr %s185, 4
        %s187 = scalar_lea.vmem [#allocation2], %s186
        %p188 = pneg %p42
        %p189 = pneg %p39
        %p190 = pneg %p63
        %p191 = pneg %p60
        %p192 = pneg %p84
        %p193 = pneg %p81
        %p194 = pneg %p110
        %p195 = pneg %p107
        %s196 = sand.u32 %s97, 1
        %s197 = scalar_lea.sflag [#allocation4], %s196
        %s198 = sand.u32 %s97, 1
        %s199 = smul.addr %s198, 8
        %s200 = scalar_lea.vmem [#allocation7], %s199
        %v202 = vld [vmem:[%s174] sm:$0xf]
        %v203 = vld [vmem:[#allocation5] sm:$0xff]
        %v204 = vld [vmem:[#allocation5 + $0x8] sm:$0xf]
        %v205 = vld [vmem:[#allocation5 + $0xc] sm:$0xff]
        %v206 = vld [vmem:[#allocation5 + $0x14] sm:$0xf]
        %v207 = vld [vmem:[#allocation5 + $0x18] sm:$0xff]
        %v208 = vld [vmem:[#allocation5 + $0x20] sm:$0xf]
        %v209 = vld [vmem:[#allocation5 + $0x24] sm:$0xff]
        %v210 = vld [vmem:[#allocation5 + $0x2c] sm:$0xf]
        %v211 = vld [vmem:[#allocation5 + $0x30] sm:$0xff]
        %v212 = vld [vmem:[#allocation5 + $0x38] sm:$0xf]
        %v213 = vld [vmem:[#allocation5 + $0x3c] sm:$0xff]
        %v214 = vld [vmem:[#allocation5 + $0x44] sm:$0xf]
        %v215 = vld [vmem:[#allocation5 + $0x48] sm:$0xff]
        %v216 = vld [vmem:[#allocation5 + $0x50] sm:$0xf]
        %v217 = vld [vmem:[#allocation5 + $0x54] sm:$0xff]
        %v218 = vld [vmem:[#allocation5 + $0x5c] sm:$0xf]
        %v219 = vld [vmem:[#allocation5 + $0x60] sm:$0xff]
        %v220 = vld [vmem:[#allocation5 + $0x68] sm:$0xf]
        %v221 = vld [vmem:[#allocation5 + $0x6c] sm:$0xff]
        %v222 = vld [vmem:[#allocation5 + $0x74] sm:$0xf]
        %v223 = vld [vmem:[#allocation5 + $0x78] sm:$0xff]
        %v224 = vld [vmem:[#allocation5 + $0x80] sm:$0xf]
        %v225 = vld [vmem:[#allocation5 + $0x84] sm:$0xff]
        %v226 = vld [vmem:[#allocation5 + $0x8c] sm:$0xf]
        %v227 = vld [vmem:[#allocation5 + $0x90] sm:$0xff]
        %v228 = vld [vmem:[#allocation5 + $0x98] sm:$0xf]
        %v229 = vld [vmem:[#allocation5 + $0x9c] sm:$0xff]
        %v230 = vld [vmem:[#allocation5 + $0xa4] sm:$0xf]
        %v231 = vld [vmem:[#allocation5 + $0xa8] sm:$0xff]
        %v232 = vld [vmem:[#allocation5 + $0xb0] sm:$0xf]
        %v233 = vld [vmem:[#allocation5 + $0xb4] sm:$0xff]
        %v234 = vld [vmem:[#allocation5 + $0xbc] sm:$0xf]
        %v235 = vld [vmem:[%s2] sm:$0x7]
        %v237 = vlaneseq
        %v238 = vshrl.u32 %v237, 7
        %v239 = vsub.s32 0, %v238
        %v240 = vrot.slane %v235, %v239
        %v241 = vlaneseq
        %v242 = vshrl.u32 %v241, 7
        %v243 = vsub.s32 1, %v242
        %v244 = vrot.slane %v235, %v243
        %v245 = vlaneseq
        %v246 = vshrl.u32 %v245, 7
        %v247 = vsub.s32 2, %v246
        %v248 = vrot.slane %v235, %v247
        %v284 = vunpack.c.l.b16 %v203
        %v285 = vunpack.c.h.b16 %v203
        %v286 = vunpack.c.l.b16 %v204
        %v287 = vunpack.c.l.b16 %v205
        %v288 = vunpack.c.h.b16 %v205
        %v289 = vunpack.c.l.b16 %v206
        %v290 = vunpack.c.l.b16 %v207
        %v291 = vunpack.c.h.b16 %v207
        %v292 = vunpack.c.l.b16 %v208
        %v293 = vunpack.c.l.b16 %v209
        %v294 = vunpack.c.h.b16 %v209
        %v295 = vunpack.c.l.b16 %v210
        %v296 = vunpack.c.l.b16 %v211
        %v297 = vunpack.c.h.b16 %v211
        %v298 = vunpack.c.l.b16 %v212
        %v299 = vunpack.c.l.b16 %v213
        %v300 = vunpack.c.h.b16 %v213
        %v301 = vunpack.c.l.b16 %v214
        %v302 = vunpack.c.l.b16 %v215
        %v303 = vunpack.c.h.b16 %v215
        %v304 = vunpack.c.l.b16 %v216
        %v305 = vunpack.c.l.b16 %v217
        %v306 = vunpack.c.h.b16 %v217
        %v307 = vunpack.c.l.b16 %v218
        %v308 = vunpack.c.l.b16 %v219
        %v309 = vunpack.c.h.b16 %v219
        %v310 = vunpack.c.l.b16 %v220
        %v311 = vunpack.c.l.b16 %v221
        %v312 = vunpack.c.h.b16 %v221
        %v313 = vunpack.c.l.b16 %v222
        %v314 = vunpack.c.l.b16 %v223
        %v315 = vunpack.c.h.b16 %v223
        %v316 = vunpack.c.l.b16 %v224
        %v317 = vunpack.c.l.b16 %v225
        %v318 = vunpack.c.h.b16 %v225
        %v319 = vunpack.c.l.b16 %v226
        %v320 = vunpack.c.l.b16 %v227
        %v321 = vunpack.c.h.b16 %v227
        %v322 = vunpack.c.l.b16 %v228
        %v323 = vunpack.c.l.b16 %v229
        %v324 = vunpack.c.h.b16 %v229
        %v325 = vunpack.c.l.b16 %v230
        %v326 = vunpack.c.l.b16 %v231
        %v327 = vunpack.c.h.b16 %v231
        %v328 = vunpack.c.l.b16 %v232
        %v329 = vunpack.c.l.b16 %v233
        %v330 = vunpack.c.h.b16 %v233
        %v331 = vunpack.c.l.b16 %v234
        %v332 = vpack.c.b16 %v287, %v284
        %v333 = vpack.c.b16 %v288, %v285
        %v334 = vpack.c.b16 %v289, %v286
        %v335 = vpack.c.b16 %v293, %v290
        %v336 = vpack.c.b16 %v294, %v291
        %v337 = vpack.c.b16 %v295, %v292
        %v338 = vpack.c.b16 %v299, %v296
        %v339 = vpack.c.b16 %v300, %v297
        %v340 = vpack.c.b16 %v301, %v298
        %v341 = vpack.c.b16 %v305, %v302
        %v342 = vpack.c.b16 %v306, %v303
        %v343 = vpack.c.b16 %v307, %v304
        %v344 = vpack.c.b16 %v311, %v308
        %v345 = vpack.c.b16 %v312, %v309
        %v346 = vpack.c.b16 %v313, %v310
        %v347 = vpack.c.b16 %v317, %v314
        %v348 = vpack.c.b16 %v318, %v315
        %v349 = vpack.c.b16 %v319, %v316
        %v350 = vpack.c.b16 %v323, %v320
        %v351 = vpack.c.b16 %v324, %v321
        %v352 = vpack.c.b16 %v325, %v322
        %v353 = vpack.c.b16 %v329, %v326
        %v354 = vpack.c.b16 %v330, %v327
        %v355 = vpack.c.b16 %v331, %v328
        %380 = vmatprep.subr.bf16.mxu0 %v333
        %381 = vmatpush1.bf16.msra.mxu0 %v332
        %382 = vmatprep.subr.bf16.mxu0 %v336
        %383 = vmatpush1.bf16.msra.mxu0 %v335
        %384 = vmatprep.subr.bf16.mxu0 %v339
        %385 = vmatpush1.bf16.msra.mxu0 %v338
        %386 = vmatprep.subr.bf16.mxu0 %v342
        %387 = vmatpush1.bf16.msra.mxu0 %v341
        %388 = vmatprep.subr.bf16.mxu0 %v345
        %389 = vmatpush1.bf16.msra.mxu0 %v344
        %390 = vmatprep.subr.bf16.mxu0 %v348
        %391 = vmatpush1.bf16.msra.mxu0 %v347
        %392 = vmatprep.subr.bf16.mxu0 %v351
        %393 = vmatpush1.bf16.msra.mxu0 %v350
        %394 = vmatprep.subr.bf16.mxu0 %v354
        %395 = vmatpush1.bf16.msra.mxu0 %v353
        %396 = vmatprep.subr.bf16.mxu0 0
        %397 = vmatpush1.bf16.msra.mxu0 0
        %398 = vmatprep.subr.bf16.mxu0 0
        %399 = vmatpush1.bf16.msra.mxu0 0
        %400 = vmatprep.subr.bf16.mxu0 0
        %401 = vmatpush1.bf16.msra.mxu0 0
        %402 = vmatprep.subr.bf16.mxu0 0
        %403 = vmatpush1.bf16.msra.mxu0 0
        %404 = vmatprep.subr.bf16.mxu0 0
        %405 = vmatpush1.bf16.msra.mxu0 0
        %406 = vmatprep.subr.bf16.mxu0 0
        %407 = vmatpush1.bf16.msra.mxu0 0
        %408 = vmatprep.subr.bf16.mxu0 0
        %409 = vmatpush1.bf16.msra.mxu0 0
        %410 = vmatprep.subr.bf16.mxu0 0
        %411 = vmatpush1.bf16.msra.mxu0 0
        %412 = vmatprep.mubr.bf16.mxu0 0
        %413 = vmatmul.mubr.bf16.gmra.mrb[0].mxu0 %v202
        %v414 = vpop.f32.mrb[0].mxu0
        %v415 = vadd.f32 %v240, %v414
        %v416 = vpop.f32.mrb[0].mxu0
        %v417 = vadd.f32 %v244, %v416
        %v418 = vpop.f32.mrb[0].mxu0
        %v419 = vpop.f32.mrb[0].mxu0
        %420 = vdwg.mxu0
        %421 = vmatprep.subr.bf16.mxu0 0
        %422 = vmatpush1.bf16.msra.mxu0 %v334
        %423 = vmatprep.subr.bf16.mxu0 0
        %424 = vmatpush1.bf16.msra.mxu0 %v337
        %425 = vmatprep.subr.bf16.mxu0 0
        %426 = vmatpush1.bf16.msra.mxu0 %v340
        %427 = vmatprep.subr.bf16.mxu0 0
        %428 = vmatpush1.bf16.msra.mxu0 %v343
        %429 = vmatprep.subr.bf16.mxu0 0
        %430 = vmatpush1.bf16.msra.mxu0 %v346
        %431 = vmatprep.subr.bf16.mxu0 0
        %432 = vmatpush1.bf16.msra.mxu0 %v349
        %433 = vmatprep.subr.bf16.mxu0 0
        %434 = vmatpush1.bf16.msra.mxu0 %v352
        %435 = vmatprep.subr.bf16.mxu0 0
        %436 = vmatpush1.bf16.msra.mxu0 %v355
        %437 = vmatprep.subr.bf16.mxu0 0
        %438 = vmatpush1.bf16.msra.mxu0 0
        %439 = vmatprep.subr.bf16.mxu0 0
        %440 = vmatpush1.bf16.msra.mxu0 0
        %441 = vmatprep.subr.bf16.mxu0 0
        %442 = vmatpush1.bf16.msra.mxu0 0
        %443 = vmatprep.subr.bf16.mxu0 0
        %444 = vmatpush1.bf16.msra.mxu0 0
        %445 = vmatprep.subr.bf16.mxu0 0
        %446 = vmatpush1.bf16.msra.mxu0 0
        %447 = vmatprep.subr.bf16.mxu0 0
        %448 = vmatpush1.bf16.msra.mxu0 0
        %449 = vmatprep.subr.bf16.mxu0 0
        %450 = vmatpush1.bf16.msra.mxu0 0
        %451 = vmatprep.subr.bf16.mxu0 0
        %452 = vmatpush1.bf16.msra.mxu0 0
        %453 = vmatprep.mubr.bf16.mxu0 0
        %454 = vmatmul.mubr.bf16.gmra.mrb[0].mxu0 %v202
        %v455 = vpop.f32.mrb[0].mxu0
        %v456 = vadd.f32 %v248, %v455
        %v457 = vpop.f32.mrb[0].mxu0
        %v458 = vpop.f32.mrb[0].mxu0
        %v459 = vpop.f32.mrb[0].mxu0
        %460 = vdwg.mxu0
        %v461 = vpack.c.bf16 %v415, %v415
        %v462 = vpack.c.bf16 %v417, %v417
        %v463 = vpack.c.bf16 %v456, %v456
        %464 = vmatprep.subr.bf16.mxu0 0
        %465 = vmatpush1.bf16.xpose.msra.mxu0 %v462
        %466 = vmatprep.subr.bf16.mxu0 0
        %467 = vmatpush1.bf16.xpose.msra.mxu0 0
        %468 = vmatprep.subr.bf16.mxu0 0
        %469 = vmatpush1.bf16.xpose.msra.mxu0 0
        %470 = vmatprep.subr.bf16.mxu0 0
        %471 = vmatpush1.bf16.xpose.msra.mxu0 0
        %472 = vmatprep.subr.bf16.mxu0 0
        %473 = vmatpush1.bf16.xpose.msra.mxu0 0
        %474 = vmatprep.subr.bf16.mxu0 0
        %475 = vmatpush1.bf16.xpose.msra.mxu0 0
        %476 = vmatprep.subr.bf16.mxu0 0
        %477 = vmatpush1.bf16.xpose.msra.mxu0 0
        %478 = vmatprep.subr.bf16.mxu0 0
        %479 = vmatpush1.bf16.xpose.msra.mxu0 0
        %480 = vmatprep.subr.bf16.mxu0 0
        %481 = vmatpush1.bf16.xpose.msra.mxu0 0
        %482 = vmatprep.subr.bf16.mxu0 0
        %483 = vmatpush1.bf16.xpose.msra.mxu0 0
        %484 = vmatprep.subr.bf16.mxu0 0
        %485 = vmatpush1.bf16.xpose.msra.mxu0 0
        %486 = vmatprep.subr.bf16.mxu0 0
        %487 = vmatpush1.bf16.xpose.msra.mxu0 0
        %488 = vmatprep.subr.bf16.mxu0 0
        %489 = vmatpush1.bf16.xpose.msra.mxu0 0
        %490 = vmatprep.subr.bf16.mxu0 0
        %491 = vmatpush1.bf16.xpose.msra.mxu0 0
        %492 = vmatprep.subr.bf16.mxu0 0
        %493 = vmatpush1.bf16.xpose.msra.mxu0 0
        %494 = vmatprep.subr.bf16.mxu0 0
        %495 = vmatpush1.bf16.xpose.msra.mxu0 0
        %496 = vmatprep.mubr.bf16.mxu0 0
        %497 = vmatmul.mubr.bf16.gmra.mrb[0].mxu0 %v461
        %v498 = vpop.f32.mrb[0].mxu0
        %v499 = vadd.f32 0.0, %v498
        %v500 = vpop.f32.mrb[0].mxu0
        %v501 = vpop.f32.mrb[0].mxu0
        %v502 = vpop.f32.mrb[0].mxu0
        %503 = vdwg.mxu0
        %vm504 = vcmask 64512
        %v505 = vsel %vm504, %v499, -inf
        %506 = vmax.xlane.f32.xlu0 %v505
        %v507 = vpop.xlane.xlu0 %506
        %v508 = vsub.f32 %v499, %v507
        %v509 = vmul.f32 %v508, 1.442695
        %v510 = vpow.pop %v509
        %v511 = vsel %vm504, %v510, 0.0
        %512 = vadd.xlane.f32.xlu0 %v511
        %v513 = vpop.xlane.xlu0 %512
        %v514 = vrcp.pop %v513
        %v515 = vmul.f32 %v510, %v514
        %v516 = vpack.c.bf16 %v515, %v515
        %v518 = vsel %vm504, %v516, 0
        %vm520 = vcmask 1043456
        %v522 = vsel %vm520, %v463, 0
        %524 = vmatprep.subr.bf16.mxu0 0
        %525 = vmatpush1.bf16.msra.mxu0 %v522
        %526 = vmatprep.subr.bf16.mxu0 0
        %527 = vmatpush1.bf16.msra.mxu0 0
        %528 = vmatprep.subr.bf16.mxu0 0
        %529 = vmatpush1.bf16.msra.mxu0 0
        %530 = vmatprep.subr.bf16.mxu0 0
        %531 = vmatpush1.bf16.msra.mxu0 0
        %532 = vmatprep.subr.bf16.mxu0 0
        %533 = vmatpush1.bf16.msra.mxu0 0
        %534 = vmatprep.subr.bf16.mxu0 0
        %535 = vmatpush1.bf16.msra.mxu0 0
        %536 = vmatprep.subr.bf16.mxu0 0
        %537 = vmatpush1.bf16.msra.mxu0 0
        %538 = vmatprep.subr.bf16.mxu0 0
        %539 = vmatpush1.bf16.msra.mxu0 0
        %540 = vmatprep.subr.bf16.mxu0 0
        %541 = vmatpush1.bf16.msra.mxu0 0
        %542 = vmatprep.subr.bf16.mxu0 0
        %543 = vmatpush1.bf16.msra.mxu0 0
        %544 = vmatprep.subr.bf16.mxu0 0
        %545 = vmatpush1.bf16.msra.mxu0 0
        %546 = vmatprep.subr.bf16.mxu0 0
        %547 = vmatpush1.bf16.msra.mxu0 0
        %548 = vmatprep.subr.bf16.mxu0 0
        %549 = vmatpush1.bf16.msra.mxu0 0
        %550 = vmatprep.subr.bf16.mxu0 0
        %551 = vmatpush1.bf16.msra.mxu0 0
        %552 = vmatprep.subr.bf16.mxu0 0
        %553 = vmatpush1.bf16.msra.mxu0 0
        %554 = vmatprep.subr.bf16.mxu0 0
        %555 = vmatpush1.bf16.msra.mxu0 0
        %556 = vmatprep.mubr.bf16.mxu0 0
        %557 = vmatmul.mubr.bf16.gmra.mrb[0].mxu0 %v518
        %v558 = vpop.f32.mrb[0].mxu0
        %v559 = vadd.f32 0.0, %v558
        %v560 = vpop.f32.mrb[0].mxu0
        %v561 = vpop.f32.mrb[0].mxu0
        %v562 = vpop.f32.mrb[0].mxu0
        %563 = vdwg.mxu0
        %564 = vst [vmem:[%s200] sm:$0xff] %v559
        %s565 = sand.u32 %s97, 1
        %s566 = scalar_lea.sflag [#allocation4], %s565
        %s567 = sand.u32 %s97, 1
        %s568 = smul.addr %s567, 8
        %s569 = scalar_lea.vmem [#allocation7], %s568
        // Predicated region
        $region41: #{tpu_custom_call.1} parent=31 // pred_check
          %p570 = pneg %p107
        $region42: #{tpu_custom_call.1} parent=31 // pred_check_branch
          %572 = sbr.rel (%p570) target = $region44
        $region43: #{tpu_custom_call.1} parent=31 // pred_region
          %s574 = ssub.s32 128, 128
          %575 = vsyncadd %s566, %s574
          %s576 = smul.addr %s21, 128
          %s577 = scalar_lea.hbm %s3, %s576
          %s579 = sshll.u32 %s569, 4
          %s580 = int_to_ptr.vmem [resolvable:$true] %s579
          %582 = dma.vmem_to_hbm [thread:$0]  %s580, 128, %s577, %s566
        $region44: #{tpu_custom_call.1} parent=31 // pred_fallthru
          _
      $region32: #{tpu_custom_call.1} parent=5 // pred_fallthru
        _
      %p583 = scmp.le.s32.totalorder 2, %s16
      // Predicated region
      $region45: #{tpu_custom_call.1} parent=5 // pred_check
        %p584 = pneg %p583
      $region46: #{tpu_custom_call.1} parent=5 // pred_check_branch
        %586 = sbr.rel (%p584) target = $region48
      $region47: #{tpu_custom_call.1} parent=5 // pred_region
        %s587 = ssub.s32 %s16, 2
        // Predicated region
        $region49: #{tpu_custom_call.1} parent=47 // pred_check
          %p588 = pneg %p113
        $region50: #{tpu_custom_call.1} parent=47 // pred_check_branch
          %590 = sbr.rel (%p588) target = $region52
        $region51: #{tpu_custom_call.1} parent=47 // pred_region
          %s591 = sand.u32 %s98, 1
          %s592 = scalar_lea.sflag [#allocation4], %s591
          %s593 = sand.u32 %s98, 1
          %s594 = smul.addr %s593, 8
          %s595 = scalar_lea.vmem [#allocation7], %s594
          %596 = dma.done %s592, 128
        $region52: #{tpu_custom_call.1} parent=47 // pred_fallthru
          _
      $region48: #{tpu_custom_call.1} parent=5 // pred_fallthru
        _
    $region6: #{tpu_custom_call.1} parent=1 // loop_footer
      %s20 = sadd.s32 1, %s16
    $region7: #{tpu_custom_call.1} parent=1 // loop_footer_branch
      %15 = sbr.rel target = $region3
    $region8: #{tpu_custom_call.1} parent=1 // loop_exit
      _
    %597 = vsyncpa [#allocation3], 1
    %s598 = scalar_lea.sflag [#allocation3], 1
    %599 = vsyncpa %s598, 1
    %600 = vsyncpa [#allocation6], 1
    %601 = vsyncpa [#allocation4], 1
    %s602 = scalar_lea.sflag [#allocation4], 1
    %603 = vsyncpa %s602, 1

</llo_original>
